<compile_context>
chip_gen: v7x
topology: tpu7x:2x2x1
jax: 0.10.0
libtpu: 0.0.40
codegen_flags: <defaults>
</compile_context>

<pallas_src>
import functools

import jax
import jax.numpy as jnp
from jax.experimental import pallas as pl
from jax.experimental.pallas import tpu as pltpu


def _round_up(a, b):
    return ((a + b - 1) // b) * b


def _iou_kernel(y_ref, x_ref, iou_ref, s_xy, s_x, s_y, *, smooth, hw, y_is_labels):
    """One (batch, spatial-tile) grid step.

    x_ref  : (1, C, LANE)  predictions (any float dtype; upcast in-kernel)
    y_ref  : (1, 1, LANE)  int32 label map   OR   (1, C, LANE) float targets
    iou_ref: (1, C, 1)     per-(b, c) IoU, written on the last spatial tile
    s_xy/s_x/s_y : (C, 1) f32 VMEM accumulators for Σ(x*y), Σx, Σy
    """
    k = pl.program_id(1)

    @pl.when(k == 0)
    def _():
        s_xy[...] = jnp.zeros_like(s_xy)
        s_x[...] = jnp.zeros_like(s_x)
        s_y[...] = jnp.zeros_like(s_y)

    x = x_ref[0].astype(jnp.float32)                        # (C, LANE)
    num_c, lane = x.shape

    if y_is_labels:
        lbl = y_ref[0]                                      # (1, LANE) int32
        cls = jax.lax.broadcasted_iota(jnp.int32, (num_c, lane), 0)
        y = (lbl == cls).astype(jnp.float32)                # one-hot built on-chip
    else:
        y = y_ref[0].astype(jnp.float32)                    # (C, LANE)

    if hw % lane != 0:                                      # ragged spatial tail
        pos = k * lane + jax.lax.broadcasted_iota(jnp.int32, (num_c, lane), 1)
        valid = pos < hw
        x = jnp.where(valid, x, 0.0)
        y = jnp.where(valid, y, 0.0)

    # Single multiply per element; cross-lane reduce once per (wide) tile.
    s_xy[...] += jnp.sum(x * y, axis=-1, keepdims=True)
    s_x[...] += jnp.sum(x, axis=-1, keepdims=True)
    s_y[...] += jnp.sum(y, axis=-1, keepdims=True)

    @pl.when(k == pl.num_programs(1) - 1)
    def _():
        tp = s_xy[...]
        fp = s_x[...] - tp
        fn = s_y[...] - tp
        nominator = tp + smooth
        denominator = tp + fp + fn + smooth
        iou_ref[0] = nominator / (denominator + 1e-8)


def _choose_lane_tile(hw, bytes_per_lane, vmem_budget=6 << 20):
    """Largest multiple-of-128 lane tile whose double-buffered input footprint
    stays under `vmem_budget` (keeps v5e's 16 MiB scoped default comfortable
    and is well inside v6e/v7x budgets)."""
    hw_pad = _round_up(hw, 128)
    max_lane = max(128, (vmem_budget // (2 * bytes_per_lane)) // 128 * 128)
    return min(hw_pad, max_lane)


def iou_pallas(x, y, smooth=1.0):
    """IOU.forward(x, y) with default module args.

    x: (B, C, H, W) float predictions (NCHW, as in PyTorch)
    y: label map (B, H, W) / (B, 1, H, W) integer, or same-shape float targets
    Returns a scalar float32 = mean over (B, C) of per-class soft IoU.
    """
    B, C, H, W = x.shape
    HW = H * W

    x3 = x.reshape(B, C, HW)             # contiguous trailing-dim merge: no HBM copy
    y_is_labels = tuple(y.shape) != tuple(x.shape)
    if y_is_labels:
        # Stream the int label map; the one-hot is built inside the kernel.
        y3 = y.reshape(B, 1, HW).astype(jnp.int32)
        y_rows = 1
    else:
        # Caller already supplies dense (possibly soft) targets of x's shape.
        y3 = y.reshape(B, C, HW)
        y_rows = C

    bytes_per_lane = C * x3.dtype.itemsize + y_rows * y3.dtype.itemsize
    lane = _choose_lane_tile(HW, bytes_per_lane)
    nk = -(-HW // lane)

    kernel = functools.partial(
        _iou_kernel, smooth=float(smooth), hw=HW, y_is_labels=y_is_labels)

    iou_bc = pl.pallas_call(
        kernel,
        out_shape=jax.ShapeDtypeStruct((B, C, 1), jnp.float32),
        grid_spec=pltpu.PrefetchScalarGridSpec(
            num_scalar_prefetch=0,
            grid=(B, nk),
            in_specs=[
                pl.BlockSpec((1, y_rows, lane), lambda b, k: (b, 0, k)),
                pl.BlockSpec((1, C, lane), lambda b, k: (b, 0, k)),
            ],
            out_specs=pl.BlockSpec((1, C, 1), lambda b, k: (b, 0, 0)),
            scratch_shapes=[
                pltpu.VMEM((C, 1), jnp.float32),   # Σ x*y  (= tp)
                pltpu.VMEM((C, 1), jnp.float32),   # Σ x
                pltpu.VMEM((C, 1), jnp.float32),   # Σ y
            ],
        ),
        compiler_params=pltpu.CompilerParams(
            dimension_semantics=("parallel", "arbitrary"),
        ),
    )(y3, x3)

    # do_bg=True, batch_dice=False -> plain mean over all (b, c)
    return jnp.mean(iou_bc)


def iou_reference(x, y, smooth=1.0):
    """Pure-JAX reference mirroring the PyTorch module (defaults)."""
    B, C, H, W = x.shape
    if y.shape == x.shape:
        y_onehot = y.astype(jnp.float32)
    else:
        lbl = y.reshape(B, H, W).astype(jnp.int32)
        y_onehot = jax.nn.one_hot(lbl, C, axis=1, dtype=jnp.float32)
    xf = x.astype(jnp.float32)
    tp = jnp.sum(xf * y_onehot, axis=(2, 3))
    fp = jnp.sum(xf * (1.0 - y_onehot), axis=(2, 3))
    fn = jnp.sum((1.0 - xf) * y_onehot, axis=(2, 3))
    iou = (tp + smooth) / (tp + fp + fn + smooth + 1e-8)
    return jnp.mean(iou)


if __name__ == "__main__":
    key = jax.random.PRNGKey(0)
    kx, ky = jax.random.split(key)

    B, C, H, W = 2, 4, 16, 16
    # x: soft predictions in [0, 1] (the module is typically fed probabilities)
    x = jax.random.uniform(kx, (B, C, H, W), dtype=jnp.float32)
    # y: integer label map (B, H, W) -> one-hot path of get_tp_fp_fn_tn
    y = jax.random.randint(ky, (B, H, W), 0, C, dtype=jnp.int32)

    out = jax.block_until_ready(iou_pallas(x, y, smooth=1.0))

    ref = iou_reference(x, y, smooth=1.0)
    assert jnp.allclose(out, ref, rtol=1e-5, atol=1e-5), (out, ref)

    print("KERNEL_OK")
</pallas_src>

<mosaic_0001>
module attributes {stable_mosaic.version = 11 : i64} {
  func.func @_iou_kernel(%arg0: i32, %arg1: i32, %arg2: memref<1x1x256xi32, #tpu.memory_space<vmem>>, %arg3: memref<1x4x256xf32, #tpu.memory_space<vmem>>, %arg4: memref<1x4x1xf32, #tpu.memory_space<vmem>>, %arg5: memref<4x1xf32, #tpu.memory_space<vmem>>, %arg6: memref<4x1xf32, #tpu.memory_space<vmem>>, %arg7: memref<4x1xf32, #tpu.memory_space<vmem>>) attributes {dimension_semantics = [#tpu.dimension_semantics<parallel>, #tpu.dimension_semantics<arbitrary>], iteration_bounds = array<i64: 2, 1>, scalar_prefetch = 0 : i64, scratch_operands = 3 : i64, tpu.core_type = #tpu.core_type<tc>, window_params = [{transform_indices = @transform_0, window_bounds = array<i64: 1, 1, 256>}, {transform_indices = @transform_1, window_bounds = array<i64: 1, 4, 256>}, {transform_indices = @transform_2, window_bounds = array<i64: 1, 4, 1>}]} {
    %c0_i32 = arith.constant 0 : i32
    %0 = arith.cmpi eq, %arg1, %c0_i32 : i32
    %1 = arith.extui %0 : i1 to i32
    %c0_i32_0 = arith.constant 0 : i32
    %2 = arith.cmpi ne, %1, %c0_i32_0 : i32
    scf.if %2 {
      %cst_22 = arith.constant 0.000000e+00 : f32
      %31 = vector.broadcast %cst_22 : f32 to vector<4x1xf32>
      %c0_23 = arith.constant 0 : index
      %c0_24 = arith.constant 0 : index
      %32 = vector.load %arg5[%c0_23, %c0_24] : memref<4x1xf32, #tpu.memory_space<vmem>>, vector<4x1xf32>
      tpu.vector_store %arg5[%c0_23, %c0_24], %31 {strides = array<i32>} : memref<4x1xf32, #tpu.memory_space<vmem>>, vector<4x1xf32>,
      %cst_25 = arith.constant 0.000000e+00 : f32
      %33 = vector.broadcast %cst_25 : f32 to vector<4x1xf32>
      %c0_26 = arith.constant 0 : index
      %c0_27 = arith.constant 0 : index
      %34 = vector.load %arg6[%c0_26, %c0_27] : memref<4x1xf32, #tpu.memory_space<vmem>>, vector<4x1xf32>
      tpu.vector_store %arg6[%c0_26, %c0_27], %33 {strides = array<i32>} : memref<4x1xf32, #tpu.memory_space<vmem>>, vector<4x1xf32>,
      %cst_28 = arith.constant 0.000000e+00 : f32
      %35 = vector.broadcast %cst_28 : f32 to vector<4x1xf32>
      %c0_29 = arith.constant 0 : index
      %c0_30 = arith.constant 0 : index
      %36 = vector.load %arg7[%c0_29, %c0_30] : memref<4x1xf32, #tpu.memory_space<vmem>>, vector<4x1xf32>
      tpu.vector_store %arg7[%c0_29, %c0_30], %35 {strides = array<i32>} : memref<4x1xf32, #tpu.memory_space<vmem>>, vector<4x1xf32>,
    } else {
    }
    %c0 = arith.constant 0 : index
    %c0_1 = arith.constant 0 : index
    %c0_2 = arith.constant 0 : index
    %3 = vector.load %arg3[%c0, %c0_1, %c0_2] : memref<1x4x256xf32, #tpu.memory_space<vmem>>, vector<1x4x256xf32>
    %4 = vector.shape_cast %3 : vector<1x4x256xf32> to vector<4x256xf32>
    %c0_3 = arith.constant 0 : index
    %c0_4 = arith.constant 0 : index
    %c0_5 = arith.constant 0 : index
    %5 = vector.load %arg2[%c0_3, %c0_4, %c0_5] : memref<1x1x256xi32, #tpu.memory_space<vmem>>, vector<1x1x256xi32>
    %6 = vector.shape_cast %5 : vector<1x1x256xi32> to vector<1x256xi32>
    %7 = tpu.iota {dimensions = array<i32: 0>} : vector<4x256xi32>
    %8 = vector.broadcast %6 : vector<1x256xi32> to vector<4x256xi32>
    %9 = arith.cmpi eq, %8, %7 : vector<4x256xi32>
    %10 = arith.extui %9 : vector<4x256xi1> to vector<4x256xi32>
    %11 = arith.sitofp %10 : vector<4x256xi32> to vector<4x256xf32>
    %c0_6 = arith.constant 0 : index
    %c0_7 = arith.constant 0 : index
    %12 = vector.load %arg5[%c0_6, %c0_7] : memref<4x1xf32, #tpu.memory_space<vmem>>, vector<4x1xf32>
    %13 = arith.mulf %4, %11 : vector<4x256xf32>
    %cst = arith.constant dense<0.000000e+00> : vector<4xf32>
    %14 = vector.multi_reduction <add>, %13, %cst [1] : vector<4x256xf32> to vector<4xf32>
    %15 = vector.shape_cast %14 : vector<4xf32> to vector<4x1xf32>
    %16 = arith.addf %12, %15 : vector<4x1xf32>
    %c0_8 = arith.constant 0 : index
    %c0_9 = arith.constant 0 : index
    %17 = vector.load %arg5[%c0_8, %c0_9] : memref<4x1xf32, #tpu.memory_space<vmem>>, vector<4x1xf32>
    tpu.vector_store %arg5[%c0_8, %c0_9], %16 {strides = array<i32>} : memref<4x1xf32, #tpu.memory_space<vmem>>, vector<4x1xf32>,
    %c0_10 = arith.constant 0 : index
    %c0_11 = arith.constant 0 : index
    %18 = vector.load %arg6[%c0_10, %c0_11] : memref<4x1xf32, #tpu.memory_space<vmem>>, vector<4x1xf32>
    %cst_12 = arith.constant dense<0.000000e+00> : vector<4xf32>
    %19 = vector.multi_reduction <add>, %4, %cst_12 [1] : vector<4x256xf32> to vector<4xf32>
    %20 = vector.shape_cast %19 : vector<4xf32> to vector<4x1xf32>
    %21 = arith.addf %18, %20 : vector<4x1xf32>
    %c0_13 = arith.constant 0 : index
    %c0_14 = arith.constant 0 : index
    %22 = vector.load %arg6[%c0_13, %c0_14] : memref<4x1xf32, #tpu.memory_space<vmem>>, vector<4x1xf32>
    tpu.vector_store %arg6[%c0_13, %c0_14], %21 {strides = array<i32>} : memref<4x1xf32, #tpu.memory_space<vmem>>, vector<4x1xf32>,
    %c0_15 = arith.constant 0 : index
    %c0_16 = arith.constant 0 : index
    %23 = vector.load %arg7[%c0_15, %c0_16] : memref<4x1xf32, #tpu.memory_space<vmem>>, vector<4x1xf32>
    %cst_17 = arith.constant dense<0.000000e+00> : vector<4xf32>
    %24 = vector.multi_reduction <add>, %11, %cst_17 [1] : vector<4x256xf32> to vector<4xf32>
    %25 = vector.shape_cast %24 : vector<4xf32> to vector<4x1xf32>
    %26 = arith.addf %23, %25 : vector<4x1xf32>
    %c0_18 = arith.constant 0 : index
    %c0_19 = arith.constant 0 : index
    %27 = vector.load %arg7[%c0_18, %c0_19] : memref<4x1xf32, #tpu.memory_space<vmem>>, vector<4x1xf32>
    tpu.vector_store %arg7[%c0_18, %c0_19], %26 {strides = array<i32>} : memref<4x1xf32, #tpu.memory_space<vmem>>, vector<4x1xf32>,
    %c0_i32_20 = arith.constant 0 : i32
    %28 = arith.cmpi eq, %arg1, %c0_i32_20 : i32
    %29 = arith.extui %28 : i1 to i32
    %c0_i32_21 = arith.constant 0 : i32
    %30 = arith.cmpi ne, %29, %c0_i32_21 : i32
    scf.if %30 {
      %c0_22 = arith.constant 0 : index
      %c0_23 = arith.constant 0 : index
      %31 = vector.load %arg5[%c0_22, %c0_23] : memref<4x1xf32, #tpu.memory_space<vmem>>, vector<4x1xf32>
      %c0_24 = arith.constant 0 : index
      %c0_25 = arith.constant 0 : index
      %32 = vector.load %arg6[%c0_24, %c0_25] : memref<4x1xf32, #tpu.memory_space<vmem>>, vector<4x1xf32>
      %33 = arith.subf %32, %31 : vector<4x1xf32>
      %c0_26 = arith.constant 0 : index
      %c0_27 = arith.constant 0 : index
      %34 = vector.load %arg7[%c0_26, %c0_27] : memref<4x1xf32, #tpu.memory_space<vmem>>, vector<4x1xf32>
      %35 = arith.subf %34, %31 : vector<4x1xf32>
      %cst_28 = arith.constant 1.000000e+00 : f32
      %36 = vector.broadcast %cst_28 : f32 to vector<4x1xf32>
      %37 = arith.addf %31, %36 : vector<4x1xf32>
      %38 = arith.addf %31, %33 : vector<4x1xf32>
      %39 = arith.addf %38, %35 : vector<4x1xf32>
      %cst_29 = arith.constant 1.000000e+00 : f32
      %40 = vector.broadcast %cst_29 : f32 to vector<4x1xf32>
      %41 = arith.addf %39, %40 : vector<4x1xf32>
      %cst_30 = arith.constant 9.99999993E-9 : f32
      %42 = vector.broadcast %cst_30 : f32 to vector<4x1xf32>
      %43 = arith.addf %41, %42 : vector<4x1xf32>
      %44 = arith.divf %37, %43 : vector<4x1xf32>
      %c0_31 = arith.constant 0 : index
      %c0_32 = arith.constant 0 : index
      %c0_33 = arith.constant 0 : index
      %45 = vector.load %arg4[%c0_31, %c0_32, %c0_33] : memref<1x4x1xf32, #tpu.memory_space<vmem>>, vector<1x4x1xf32>
      %46 = vector.shape_cast %45 : vector<1x4x1xf32> to vector<4x1xf32>
      %47 = vector.shape_cast %44 : vector<4x1xf32> to vector<1x4x1xf32>
      tpu.vector_store %arg4[%c0_31, %c0_32, %c0_33], %47 {strides = array<i32>} : memref<1x4x1xf32, #tpu.memory_space<vmem>>, vector<1x4x1xf32>,
    } else {
    }
    return
  }
  func.func @transform_0(%arg0: i32, %arg1: i32) -> (i32, i32, i32) {
    %c0_i32 = arith.constant 0 : i32
    %c0_i32_0 = arith.constant 0 : i32
    return %arg0, %c0_i32, %arg1 : i32, i32, i32
  }
  func.func @transform_1(%arg0: i32, %arg1: i32) -> (i32, i32, i32) {
    %c0_i32 = arith.constant 0 : i32
    %c0_i32_0 = arith.constant 0 : i32
    return %arg0, %c0_i32, %arg1 : i32, i32, i32
  }
  func.func @transform_2(%arg0: i32, %arg1: i32) -> (i32, i32, i32) {
    %c0_i32 = arith.constant 0 : i32
    %c0_i32_0 = arith.constant 0 : i32
    %c0_i32_1 = arith.constant 0 : i32
    return %arg0, %c0_i32, %c0_i32_0 : i32, i32, i32
  }
}

</mosaic_0001>

<llo_original>
// kernel: tpu_custom_call.1
$region0: #{tpu_custom_call.1}
  #allocation0 [shape = 'u32[]', space=smem, size = 0x4, offset = 0x4, fixed_abs, tag = 'smem constant byte address 0x4 - core index']
  #allocation1 [shape = 'u32[144,128]{1,0:T(1,128)}', space=vmem, size = 0x12000, scoped, tag = 'internal scratch']
  #allocation2 [shape = 'f32[4,1]{1,0:T(4,128)}', space=vmem, size = 0x800, scoped, tag = 'scratch operand']
  #allocation3 [shape = 'f32[4,1]{1,0:T(4,128)}', space=vmem, size = 0x800, scoped, tag = 'scratch operand']
  #allocation4 [shape = 'f32[4,1]{1,0:T(4,128)}', space=vmem, size = 0x800, scoped, tag = 'scratch operand']
  %s0 = inlined_call_operand.hbm [shape: s32[2,1,256], index: 0, kind: input, shape index: {}]
  %s1 = inlined_call_operand.hbm [shape: f32[2,4,256], index: 1, kind: input, shape index: {}]
  %s2 = inlined_call_operand.vmem [shape: f32[2,4,1], index: 2, kind: output, shape index: {}]
  %s3 = sld [smem:[#allocation0]]
  $region57: #{tpu_custom_call.1} parent=0
    _
  %s5 = ssub.s32 1, %s3
  %s6 = scalar_select 0, %s5, %s3
  $region1: #{tpu_custom_call.1} parent=0
    #allocation5 [shape = 'u8[2048]{0}', space=vmem, size = 0x800, scoped, tag = 'input window, operand 0']
    #allocation6 [shape = 's32[2]{0}', space=sflag, size = 0x8, scoped, tag = 'scoped memory for tpu_custom_call.1']
    #allocation7 [shape = 'u8[8192]{0}', space=vmem, size = 0x2000, scoped, tag = 'input window, operand 1']
    #allocation8 [shape = 's32[2]{0}', space=sflag, size = 0x8, scoped, tag = 'scoped memory for tpu_custom_call.1']
    %7 = vsyncpa [#allocation6], 0
    %s8 = scalar_lea.sflag [#allocation6], 1
    %9 = vsyncpa %s8, 0
    %10 = vsyncpa [#allocation8], 0
    %s11 = scalar_lea.sflag [#allocation8], 1
    %12 = vsyncpa %s11, 0
    loop: start=0, step=1, limit=4
    $region2: #{tpu_custom_call.1} parent=1 // loop_pre_header
      _
    $region3: #{tpu_custom_call.1} parent=1 // loop_header
      %s14 = sphi 0, %s18
      %p15 = scmp.ge.s32.totalorder %s14, 4
      %s21 = sphi 0, %s33
      %s22 = sphi 0, %s29
      %s23 = sphi 0, %s21
      %s24 = sphi 0, %s22
      %s25 = sphi 0, %s23
      %s26 = sphi 0, %s24
      %s38 = sphi 0, %s40
      %s41 = sphi 0, %s38
      %s42 = sphi 0, %s41
      %s58 = sphi 0, %s42
      %s66 = sphi 0, %s68
      %s69 = sphi 0, %s66
      %s70 = sphi 0, %s69
      %s86 = sphi 0, %s70
      %s92 = sphi 0, %s94
      %s95 = sphi 0, %s92
      %s96 = sphi 0, %s95
      %s112 = sphi 0, %s96
    $region4: #{tpu_custom_call.1} parent=1 // loop_header_branch
      %17 = sbr.rel (%p15) target = $region8
    $region5: #{tpu_custom_call.1} parent=1 // loop_body
      %s19 = ssub.s32 %s14, 1
      %s20 = ssub.s32 %s14, 2
      %s27 = sadd.s32 1, %s22
      %p28 = scmp.ge.s32.totalorder %s27, 1
      %s29 = scalar_select %p28, 0, %s27
      %s30 = sadd.s32 1, %s21
      %s31 = scalar_select %p28, %s30, %s21
      %p32 = scmp.ge.s32.totalorder %s31, 2
      %s33 = scalar_select %p32, 0, %s31
      %s34 = ssub.s32 %s21, %s33
      %s35 = ssub.s32 %s22, %s29
      %s36 = sor.u32 %s34, %s35
      %p37 = scmp.eq.s32.totalorder %s36, 0
      %s39 = sadd.s32 %s38, 1
      %s40 = scalar_select %p37, %s38, %s39
      %p43 = pneg %p37
      %p44 = scmp.eq.s32.totalorder %s14, 1
      %p45 = por %p43, %p44
      %p46 = scmp.ne.s32.totalorder %s38, %s41
      %p47 = scmp.eq.s32.totalorder %s14, 0
      %p48 = por %p46, %p47
      %p49 = scmp.ne.s32.totalorder %s38, %s41
      %p50 = scmp.eq.s32.totalorder %s19, 1
      %p51 = por %p49, %p50
      %p52 = scmp.ne.s32.totalorder %s41, %s42
      %p53 = scmp.eq.s32.totalorder %s19, 0
      %p54 = por %p52, %p53
      %p55 = scmp.ne.s32.totalorder %s41, %s42
      %p56 = scmp.eq.s32.totalorder %s20, 1
      %p57 = por %p55, %p56
      %p59 = scmp.ne.s32.totalorder %s42, %s58
      %p60 = scmp.eq.s32.totalorder %s20, 0
      %p61 = por %p59, %p60
      %s62 = ssub.s32 %s21, %s33
      %s63 = ssub.s32 %s22, %s29
      %s64 = sor.u32 %s62, %s63
      %p65 = scmp.eq.s32.totalorder %s64, 0
      %s67 = sadd.s32 %s66, 1
      %s68 = scalar_select %p65, %s66, %s67
      %p71 = pneg %p65
      %p72 = scmp.eq.s32.totalorder %s14, 1
      %p73 = por %p71, %p72
      %p74 = scmp.ne.s32.totalorder %s66, %s69
      %p75 = scmp.eq.s32.totalorder %s14, 0
      %p76 = por %p74, %p75
      %p77 = scmp.ne.s32.totalorder %s66, %s69
      %p78 = scmp.eq.s32.totalorder %s19, 1
      %p79 = por %p77, %p78
      %p80 = scmp.ne.s32.totalorder %s69, %s70
      %p81 = scmp.eq.s32.totalorder %s19, 0
      %p82 = por %p80, %p81
      %p83 = scmp.ne.s32.totalorder %s69, %s70
      %p84 = scmp.eq.s32.totalorder %s20, 1
      %p85 = por %p83, %p84
      %p87 = scmp.ne.s32.totalorder %s70, %s86
      %p88 = scmp.eq.s32.totalorder %s20, 0
      %p89 = por %p87, %p88
      %s90 = ssub.s32 %s21, %s33
      %p91 = scmp.eq.s32.totalorder %s90, 0
      %s93 = sadd.s32 %s92, 1
      %s94 = scalar_select %p91, %s92, %s93
      %p97 = pneg %p91
      %p98 = scmp.eq.s32.totalorder %s14, 1
      %p99 = por %p97, %p98
      %p100 = scmp.ne.s32.totalorder %s92, %s95
      %p101 = scmp.eq.s32.totalorder %s14, 0
      %p102 = por %p100, %p101
      %p103 = scmp.ne.s32.totalorder %s92, %s95
      %p104 = scmp.eq.s32.totalorder %s19, 1
      %p105 = por %p103, %p104
      %p106 = scmp.ne.s32.totalorder %s95, %s96
      %p107 = scmp.eq.s32.totalorder %s19, 0
      %p108 = por %p106, %p107
      %p109 = scmp.ne.s32.totalorder %s95, %s96
      %p110 = scmp.eq.s32.totalorder %s20, 1
      %p111 = por %p109, %p110
      %p113 = scmp.ne.s32.totalorder %s96, %s112
      %p114 = scmp.eq.s32.totalorder %s20, 0
      %p115 = por %p113, %p114
      %p116 = scmp.le.s32.totalorder 1, %s14
      %p117 = scmp.lt.s32.totalorder %s14, 3
      %p118 = pnand %p116, %p117
      %p119 = pneg %p118
      // Predicated region
      $region9: #{tpu_custom_call.1} parent=5 // pred_check
        _
      $region10: #{tpu_custom_call.1} parent=5 // pred_check_branch
        %121 = sbr.rel (%p118) target = $region12
      $region11: #{tpu_custom_call.1} parent=5 // pred_region
        %s122 = ssub.s32 %s14, 1
      $region12: #{tpu_custom_call.1} parent=5 // pred_fallthru
        _
      %p123 = scmp.lt.s32.totalorder %s14, 2
      // Predicated region
      $region13: #{tpu_custom_call.1} parent=5 // pred_check
        %p124 = pneg %p123
      $region14: #{tpu_custom_call.1} parent=5 // pred_check_branch
        %126 = sbr.rel (%p124) target = $region16
      $region15: #{tpu_custom_call.1} parent=5 // pred_region
        // Predicated region
        $region17: #{tpu_custom_call.1} parent=15 // pred_check
          %p127 = pneg %p48
        $region18: #{tpu_custom_call.1} parent=15 // pred_check_branch
          %129 = sbr.rel (%p127) target = $region20
        $region19: #{tpu_custom_call.1} parent=15 // pred_region
          %s130 = sand.u32 %s38, 1
          %s131 = scalar_lea.sflag [#allocation6], %s130
          %s132 = sand.u32 %s38, 1
          %s133 = smul.addr %s132, 2
          %s134 = scalar_lea.vmem [#allocation5], %s133
          %s135 = smul.u32 2, %s22
          %s137 = ssub.s32 32, 32
          %138 = vsyncadd %s131, %s137
          %s139 = smul.addr %s21, 2
          %s140 = sadd.s32 %s135, %s139
          %s141 = smul.addr %s140, 16
          %s142 = scalar_lea.hbm %s0, %s141
          %s144 = sshll.u32 %s134, 4
          %s145 = int_to_ptr.vmem [resolvable:$true] %s144
          %147 = dma.hbm_to_vmem [thread:$0]  %s142, 32, %s145, %s131
        $region20: #{tpu_custom_call.1} parent=15 // pred_fallthru
          _
        // Predicated region
        $region21: #{tpu_custom_call.1} parent=15 // pred_check
          %p148 = pneg %p76
        $region22: #{tpu_custom_call.1} parent=15 // pred_check_branch
          %150 = sbr.rel (%p148) target = $region24
        $region23: #{tpu_custom_call.1} parent=15 // pred_region
          %s151 = sand.u32 %s66, 1
          %s152 = scalar_lea.sflag [#allocation8], %s151
          %s153 = sand.u32 %s66, 1
          %s154 = smul.addr %s153, 8
          %s155 = scalar_lea.vmem [#allocation7], %s154
          %s156 = smul.u32 2, %s22
          %s158 = ssub.s32 128, 128
          %159 = vsyncadd %s152, %s158
          %s160 = smul.addr %s21, 2
          %s161 = sadd.s32 %s156, %s160
          %s162 = smul.addr %s161, 64
          %s163 = scalar_lea.hbm %s1, %s162
          %s165 = sshll.u32 %s155, 4
          %s166 = int_to_ptr.vmem [resolvable:$true] %s165
          %168 = dma.hbm_to_vmem [thread:$0]  %s163, 128, %s166, %s152
        $region24: #{tpu_custom_call.1} parent=15 // pred_fallthru
          _
      $region16: #{tpu_custom_call.1} parent=5 // pred_fallthru
        _
      %p169 = scmp.le.s32.totalorder 1, %s14
      %p170 = scmp.lt.s32.totalorder %s14, 3
      %p171 = pnand %p169, %p170
      %p172 = pneg %p171
      // Predicated region
      $region25: #{tpu_custom_call.1} parent=5 // pred_check
        _
      $region26: #{tpu_custom_call.1} parent=5 // pred_check_branch
        %174 = sbr.rel (%p171) target = $region28
      $region27: #{tpu_custom_call.1} parent=5 // pred_region
        %s175 = ssub.s32 %s14, 1
        %s176 = sand.u32 %s41, 1
        %s177 = scalar_lea.sflag [#allocation6], %s176
        %s178 = sand.u32 %s41, 1
        %s179 = smul.addr %s178, 2
        %s180 = scalar_lea.vmem [#allocation5], %s179
        // Predicated region
        $region29: #{tpu_custom_call.1} parent=27 // pred_check
          %p181 = pneg %p54
        $region30: #{tpu_custom_call.1} parent=27 // pred_check_branch
          %183 = sbr.rel (%p181) target = $region32
        $region31: #{tpu_custom_call.1} parent=27 // pred_region
          %184 = dma.done %s177, 32
        $region32: #{tpu_custom_call.1} parent=27 // pred_fallthru
          _
        %s185 = sand.u32 %s69, 1
        %s186 = scalar_lea.sflag [#allocation8], %s185
        %s187 = sand.u32 %s69, 1
        %s188 = smul.addr %s187, 8
        %s189 = scalar_lea.vmem [#allocation7], %s188
        // Predicated region
        $region33: #{tpu_custom_call.1} parent=27 // pred_check
          %p190 = pneg %p82
        $region34: #{tpu_custom_call.1} parent=27 // pred_check_branch
          %192 = sbr.rel (%p190) target = $region36
        $region35: #{tpu_custom_call.1} parent=27 // pred_region
          %193 = dma.done %s186, 128
        $region36: #{tpu_custom_call.1} parent=27 // pred_fallthru
          _
        %s194 = sand.u32 %s41, 1
        %s195 = scalar_lea.sflag [#allocation6], %s194
        %s196 = sand.u32 %s41, 1
        %s197 = smul.addr %s196, 2
        %s198 = scalar_lea.vmem [#allocation5], %s197
        %p199 = pneg %p54
        %p200 = pneg %p51
        %s201 = sand.u32 %s69, 1
        %s202 = scalar_lea.sflag [#allocation8], %s201
        %s203 = sand.u32 %s69, 1
        %s204 = smul.addr %s203, 8
        %s205 = scalar_lea.vmem [#allocation7], %s204
        %p206 = pneg %p82
        %p207 = pneg %p79
        %p208 = pneg %p108
        %p209 = pneg %p105
        %p210 = scmp.lt.s32.totalorder %s23, 1
        %s211 = scalar_select %p210, %s23, 1
        %s212 = smul.addr %s211, 4
        %s213 = scalar_lea.vmem %s2, %s212
        %s214 = smul.u32 2, %s24
        %s215 = smul.u32 2, %s24
        %p216 = scmp.lt.s32.totalorder %s23, 1
        %s217 = scalar_select %p216, %s23, 1
        %s218 = smul.addr %s217, 4
        %s219 = scalar_lea.vmem %s2, %s218
        %p220 = scmp.eq.s32.totalorder %s24, 0
        // Predicated region
        $region37: #{tpu_custom_call.1} parent=27 // pred_check
          %p221 = pneg %p220
        $region38: #{tpu_custom_call.1} parent=27 // pred_check_branch
          %223 = sbr.rel (%p221) target = $region40
        $region39: #{tpu_custom_call.1} parent=27 // pred_region
          %vm224 = vcmask 3072
          %225 = vst.msk [vmem:[#allocation2] sm:$0xf] %vm224, 0.0
          %226 = vst.msk [vmem:[#allocation3] sm:$0xf] %vm224, 0.0
          %227 = vst.msk [vmem:[#allocation4] sm:$0xf] %vm224, 0.0
        $region40: #{tpu_custom_call.1} parent=27 // pred_fallthru
          _
        %v228 = vld [vmem:[%s189] sm:$0xff]
        %v229 = vld [vmem:[%s180] sm:$0x3]
        %v230 = vlaneseq
        %v231 = vshrl.u32 %v230, 7
        %v232 = vlaneseq
        %v233 = vshrl.u32 %v232, 7
        %v234 = vsub.s32 0, %v233
        %v235 = vrot.slane %v229, %v234
        %v236 = vlaneseq
        %v237 = vshrl.u32 %v236, 7
        %v238 = vsub.s32 1, %v237
        %v239 = vrot.slane %v229, %v238
        %vm240 = vcmp.eq.s32.totalorder %v235, %v231
        %vm241 = vcmp.eq.s32.totalorder %v239, %v231
        %v242 = vsel %vm240, 1, 0
        %v243 = vsel %vm241, 1, 0
        %v244 = vcvt.s32.f32 %v242
        %v245 = vcvt.s32.f32 %v243
        %v246 = vld [vmem:[#allocation2] sm:$0xf]
        %v249 = vcombine.low %v244, %v245
        %v251 = vmul.f32 %v228, %v249
        %v253 = vcombine.high %v251, %v251
        %vm255 = vcmask 1043456
        %v256 = vsel %vm255, %v251, 0.0
        %v257 = vsel %vm255, %v253, 0.0
        %v258 = vadd.f32 %v256, %v257
        %259 = vadd.xlane.f32.xlu0 %v258
        %v260 = vpop.xlane.xlu0 %259
        %v261 = vadd.f32 %v246, %v260
        %vm262 = vcmask 3072
        %263 = vst.msk [vmem:[#allocation2] sm:$0xf] %vm262, %v261
        %v264 = vld [vmem:[#allocation3] sm:$0xf]
        %v266 = vcombine.high %v228, %v228
        %v268 = vsel %vm255, %v228, 0.0
        %v269 = vsel %vm255, %v266, 0.0
        %v270 = vadd.f32 %v268, %v269
        %271 = vadd.xlane.f32.xlu0 %v270
        %v272 = vpop.xlane.xlu0 %271
        %v273 = vadd.f32 %v264, %v272
        %274 = vst.msk [vmem:[#allocation3] sm:$0xf] %vm262, %v273
        %v275 = vld [vmem:[#allocation4] sm:$0xf]
        %v276 = vsel %vm255, %v244, 0.0
        %v277 = vsel %vm255, %v245, 0.0
        %v278 = vadd.f32 %v276, %v277
        %279 = vadd.xlane.f32.xlu0 %v278
        %v280 = vpop.xlane.xlu0 %279
        %v281 = vadd.f32 %v275, %v280
        %282 = vst.msk [vmem:[#allocation4] sm:$0xf] %vm262, %v281
        // Predicated region
        $region41: #{tpu_custom_call.1} parent=27 // pred_check
          %p283 = pneg %p220
        $region42: #{tpu_custom_call.1} parent=27 // pred_check_branch
          %285 = sbr.rel (%p283) target = $region44
        $region43: #{tpu_custom_call.1} parent=27 // pred_region
          %v286 = vld [vmem:[#allocation2] sm:$0xf]
          %v287 = vld [vmem:[#allocation3] sm:$0xf]
          %v288 = vsub.f32 %v287, %v286
          %v289 = vld [vmem:[#allocation4] sm:$0xf]
          %v290 = vsub.f32 %v289, %v286
          %v291 = vadd.f32 %v286, 1.0
          %v292 = vadd.f32 %v286, %v288
          %v293 = vadd.f32 %v292, %v290
          %v294 = vadd.f32 %v293, 1.0
          %v295 = vadd.f32 %v294, 1e-08
          %v296 = vrcp.pop %v295
          %v297 = vmul.f32 %v291, %v296
          %298 = vst.msk [vmem:[%s219] sm:$0xf] %vm262, %v297
        $region44: #{tpu_custom_call.1} parent=27 // pred_fallthru
          _
        %p299 = scmp.lt.s32.totalorder %s23, 1
        %s300 = scalar_select %p299, %s23, 1
        %s301 = smul.addr %s300, 4
        %s302 = scalar_lea.vmem %s2, %s301
        // Predicated region
        $region45: #{tpu_custom_call.1} parent=27 // pred_check
          %p303 = pneg %p105
        $region46: #{tpu_custom_call.1} parent=27 // pred_check_branch
          %305 = sbr.rel (%p303) target = $region48
        $region47: #{tpu_custom_call.1} parent=27 // pred_region
          _
        $region48: #{tpu_custom_call.1} parent=27 // pred_fallthru
          _
      $region28: #{tpu_custom_call.1} parent=5 // pred_fallthru
        _
      %p306 = scmp.le.s32.totalorder 2, %s14
      // Predicated region
      $region49: #{tpu_custom_call.1} parent=5 // pred_check
        %p307 = pneg %p306
      $region50: #{tpu_custom_call.1} parent=5 // pred_check_branch
        %309 = sbr.rel (%p307) target = $region52
      $region51: #{tpu_custom_call.1} parent=5 // pred_region
        %s310 = ssub.s32 %s14, 2
        // Predicated region
        $region53: #{tpu_custom_call.1} parent=51 // pred_check
          %p311 = pneg %p111
        $region54: #{tpu_custom_call.1} parent=51 // pred_check_branch
          %313 = sbr.rel (%p311) target = $region56
        $region55: #{tpu_custom_call.1} parent=51 // pred_region
          %p314 = scmp.lt.s32.totalorder %s25, 1
          %s315 = scalar_select %p314, %s25, 1
          %s316 = smul.addr %s315, 4
          %s317 = scalar_lea.vmem %s2, %s316
        $region56: #{tpu_custom_call.1} parent=51 // pred_fallthru
          _
      $region52: #{tpu_custom_call.1} parent=5 // pred_fallthru
        _
    $region6: #{tpu_custom_call.1} parent=1 // loop_footer
      %s18 = sadd.s32 1, %s14
    $region7: #{tpu_custom_call.1} parent=1 // loop_footer_branch
      %13 = sbr.rel target = $region3
    $region8: #{tpu_custom_call.1} parent=1 // loop_exit
      _
    %318 = vsyncpa [#allocation6], 1
    %s319 = scalar_lea.sflag [#allocation6], 1
    %320 = vsyncpa %s319, 1
    %321 = vsyncpa [#allocation8], 1
    %s322 = scalar_lea.sflag [#allocation8], 1
    %323 = vsyncpa %s322, 1

</llo_original>
